<compile_context>
chip_gen: v5e
topology: v5e:2x2
jax: 0.10.0
libtpu: 0.0.40
codegen_flags: <defaults>
</compile_context>

<pallas_src>
import jax
import jax.numpy as jnp
from jax.experimental import pallas as pl
from jax.experimental.pallas import tpu as pltpu

_MAX_BLOCK_ROWS = 8192       # rows per grid step (VMEM-padded footprint ~25 MiB)
_MIN_BLOCKS_FOR_SPLIT = 8    # only split into 2 partitions for larger grids


def _make_kernel(positive_reg_lb: float, n_rows: int, block_rows: int,
                 k_steps: int):
    lb = float(positive_reg_lb)

    def kernel(pred_ref, target_ref, iou_ref, sums_ref, cnt_ref):
        # sums_ref: (1, 1, 7) f32 output block, resident across the k axis
        # cnt_ref : (1, 1, 1) f32 output block, resident across the k axis
        p = pl.program_id(0)
        k = pl.program_id(1)

        @pl.when(k == 0)
        def _init():
            sums_ref[...] = jnp.zeros_like(sums_ref)
            cnt_ref[...] = jnp.zeros_like(cnt_ref)

        pred = pred_ref[...].astype(jnp.float32)      # (block_rows, 7)
        target = target_ref[...].astype(jnp.float32)  # (block_rows, 7)
        iou = iou_ref[...].astype(jnp.float32)        # (block_rows, 1)

        # SmoothL1 (beta = 1.0), elementwise on the VPU.
        d = pred - target
        ad = jnp.abs(d)
        sl1 = jnp.where(ad < 1.0, 0.5 * d * d, ad - 0.5)

        # Row validity (ragged last block / redundant clamped steps) combined
        # with the positive-sample mask.  Selection with jnp.where means OOB
        # garbage rows can never contribute NaN/Inf.
        base = (p * k_steps + k) * block_rows
        row = jax.lax.broadcasted_iota(jnp.int32, (block_rows, 1), 0)
        valid = (base + row) < n_rows
        pos = jnp.logical_and(valid, iou >= lb)       # (block_rows, 1) bool

        contrib = jnp.where(pos, sl1, 0.0)            # (block_rows, 7)
        col_sums = jnp.sum(contrib, axis=0, keepdims=True)               # (1, 7)
        n_pos = jnp.sum(pos.astype(jnp.float32), axis=0, keepdims=True)  # (1, 1)

        # Lane-wise accumulation straight into the resident output blocks.
        sums_ref[...] += col_sums.reshape(1, 1, 7)
        cnt_ref[...] += n_pos.reshape(1, 1, 1)

    return kernel


def regression_loss(pred, target, iou, config, *, block_rows=_MAX_BLOCK_ROWS):
    """pred: (N,7), target: (N,7), iou: (N,) -> scalar float32 loss."""
    n = pred.shape[0]
    lb = float(config["positive_reg_lb"])

    # Inputs stay in their natural layout; only a free (N,) -> (N, 1) reshape.
    iou2d = jnp.reshape(iou, (n, 1))

    # Row-block size: one block for small N, large blocks otherwise.
    block_rows = max(8, min(int(block_rows), ((n + 7) // 8) * 8))
    block_rows = ((block_rows + 7) // 8) * 8
    num_blocks = pl.cdiv(n, block_rows)

    # Two partitions along a leading "parallel" grid axis when the grid is
    # big enough (v7x megacore: one per TensorCore; sequential elsewhere).
    num_parts = 2 if num_blocks >= _MIN_BLOCKS_FOR_SPLIT else 1
    k_steps = pl.cdiv(num_blocks, num_parts)

    def in_map(p, k):
        # Clamp: redundant trailing steps of the last partition re-read the
        # final block; their rows fail the in-kernel validity check and
        # contribute nothing.
        blk = jnp.minimum(p * k_steps + k, num_blocks - 1)
        return (blk, 0)

    # Estimated double-buffered VMEM footprint (7- and 1-wide last dims pad
    # to 128 lanes): 3 inputs x 2 buffers x 128 lanes x 4 B per row.
    est_vmem = 3 * 2 * block_rows * 128 * 4
    params = dict(dimension_semantics=("parallel", "arbitrary"))
    if est_vmem > 12 * 1024 * 1024:
        # Raise the scoped limit only when the big-block path needs it;
        # 40 MiB leaves headroom even on v7x's 64 MiB-per-TC physical VMEM.
        params["vmem_limit_bytes"] = min(est_vmem + 8 * 1024 * 1024,
                                         40 * 1024 * 1024)

    kernel = _make_kernel(lb, n, block_rows, k_steps)

    sums, counts = pl.pallas_call(
        kernel,
        out_shape=(
            jax.ShapeDtypeStruct((num_parts, 1, 7), jnp.float32),
            jax.ShapeDtypeStruct((num_parts, 1, 1), jnp.float32),
        ),
        grid=(num_parts, k_steps),
        in_specs=[
            pl.BlockSpec((block_rows, 7), in_map),
            pl.BlockSpec((block_rows, 7), in_map),
            pl.BlockSpec((block_rows, 1), in_map),
        ],
        out_specs=(
            pl.BlockSpec((1, 1, 7), lambda p, k: (p, 0, 0)),
            pl.BlockSpec((1, 1, 1), lambda p, k: (p, 0, 0)),
        ),
        compiler_params=pltpu.CompilerParams(**params),
    )(pred, target, iou2d)

    # Tiny final combine (a few dozen bytes): fold the 1/3 location weight in
    # after reduction and do the single exact f32 divide.
    #   loss = (sum_loc/3 + sum_size + sum_rot) / num_positive
    # num_positive == 0 yields NaN, matching torch's mean over an empty tensor.
    col = jnp.sum(sums.reshape(num_parts, 7), axis=0)          # (7,)
    w = jnp.array([1.0 / 3.0] * 3 + [1.0] * 4, jnp.float32)
    return jnp.sum(col * w) / jnp.sum(counts)


def _reference_loss(pred, target, iou, config):
    """Plain-JAX reference (mirrors the PyTorch module)."""
    keep = iou >= config["positive_reg_lb"]
    p = pred[keep].astype(jnp.float32)
    t = target[keep].astype(jnp.float32)

    def smooth_l1_mean(a, b):
        d = a - b
        ad = jnp.abs(d)
        return jnp.mean(jnp.where(ad < 1.0, 0.5 * d * d, ad - 0.5))

    l_loc = smooth_l1_mean(p[:, :3], t[:, :3])
    l_size = smooth_l1_mean(p[:, 3:6], t[:, 3:6])
    l_rot = smooth_l1_mean(p[:, 6], t[:, 6])
    return l_loc + 3.0 * l_size + l_rot


if __name__ == "__main__":
    config = {"positive_reg_lb": 0.55}

    # small case: single grid step, no wrapper HBM passes
    k1, k2, k3 = jax.random.split(jax.random.PRNGKey(0), 3)
    N = 64
    pred = jax.random.normal(k1, (N, 7), dtype=jnp.float32)
    target = pred + 0.3 * jax.random.normal(k2, (N, 7), dtype=jnp.float32)
    iou = jax.random.uniform(k3, (N,), dtype=jnp.float32)  # ~half >= 0.55

    loss = regression_loss(pred, target, iou, config)
    jax.block_until_ready(loss)
    ref = _reference_loss(pred, target, iou, config)
    assert jnp.allclose(loss, ref, rtol=1e-5, atol=1e-6), (loss, ref)

    # second case: small block_rows to exercise the multi-step, two-partition
    # accumulation path plus the ragged (masked) final block at small N.
    k4, k5, k6 = jax.random.split(jax.random.PRNGKey(1), 3)
    N2 = 1000
    pred2 = jax.random.normal(k4, (N2, 7), dtype=jnp.float32)
    target2 = pred2 + 0.3 * jax.random.normal(k5, (N2, 7), dtype=jnp.float32)
    iou2 = jax.random.uniform(k6, (N2,), dtype=jnp.float32)

    loss2 = regression_loss(pred2, target2, iou2, config, block_rows=64)
    jax.block_until_ready(loss2)
    ref2 = _reference_loss(pred2, target2, iou2, config)
    assert jnp.allclose(loss2, ref2, rtol=1e-4, atol=1e-6), (loss2, ref2)

    print("KERNEL_OK")
</pallas_src>

<mosaic_0001>
module attributes {stable_mosaic.version = 11 : i64} {
  func.func @kernel(%arg0: i32, %arg1: i32, %arg2: memref<64x7xf32, #tpu.memory_space<vmem>>, %arg3: memref<64x7xf32, #tpu.memory_space<vmem>>, %arg4: memref<64x1xf32, #tpu.memory_space<vmem>>, %arg5: memref<1x1x7xf32, #tpu.memory_space<vmem>>, %arg6: memref<1x1x1xf32, #tpu.memory_space<vmem>>) attributes {dimension_semantics = [#tpu.dimension_semantics<parallel>, #tpu.dimension_semantics<arbitrary>], iteration_bounds = array<i64: 1, 1>, scalar_prefetch = 0 : i64, scratch_operands = 0 : i64, tpu.core_type = #tpu.core_type<tc>, window_params = [{transform_indices = @transform_0, window_bounds = array<i64: 64, 7>}, {transform_indices = @transform_1, window_bounds = array<i64: 64, 7>}, {transform_indices = @transform_2, window_bounds = array<i64: 64, 1>}, {transform_indices = @transform_3, window_bounds = array<i64: 1, 1, 7>}, {transform_indices = @transform_4, window_bounds = array<i64: 1, 1, 1>}]} {
    %c0_i32 = arith.constant 0 : i32
    %0 = arith.cmpi eq, %arg1, %c0_i32 : i32
    %1 = arith.extui %0 : i1 to i32
    %c0_i32_0 = arith.constant 0 : i32
    %2 = arith.cmpi ne, %1, %c0_i32_0 : i32
    scf.if %2 {
      %cst_25 = arith.constant 0.000000e+00 : f32
      %45 = vector.broadcast %cst_25 : f32 to vector<1x1x7xf32>
      %c0_26 = arith.constant 0 : index
      %c0_27 = arith.constant 0 : index
      %c0_28 = arith.constant 0 : index
      %46 = vector.load %arg5[%c0_26, %c0_27, %c0_28] : memref<1x1x7xf32, #tpu.memory_space<vmem>>, vector<1x1x7xf32>
      tpu.vector_store %arg5[%c0_26, %c0_27, %c0_28], %45 {strides = array<i32>} : memref<1x1x7xf32, #tpu.memory_space<vmem>>, vector<1x1x7xf32>,
      %cst_29 = arith.constant 0.000000e+00 : f32
      %47 = vector.broadcast %cst_29 : f32 to vector<1x1x1xf32>
      %c0_30 = arith.constant 0 : index
      %c0_31 = arith.constant 0 : index
      %c0_32 = arith.constant 0 : index
      %48 = vector.load %arg6[%c0_30, %c0_31, %c0_32] : memref<1x1x1xf32, #tpu.memory_space<vmem>>, vector<1x1x1xf32>
      tpu.vector_store %arg6[%c0_30, %c0_31, %c0_32], %47 {strides = array<i32>} : memref<1x1x1xf32, #tpu.memory_space<vmem>>, vector<1x1x1xf32>,
    } else {
    }
    %c0 = arith.constant 0 : index
    %c0_1 = arith.constant 0 : index
    %3 = vector.load %arg2[%c0, %c0_1] : memref<64x7xf32, #tpu.memory_space<vmem>>, vector<64x7xf32>
    %c0_2 = arith.constant 0 : index
    %c0_3 = arith.constant 0 : index
    %4 = vector.load %arg3[%c0_2, %c0_3] : memref<64x7xf32, #tpu.memory_space<vmem>>, vector<64x7xf32>
    %c0_4 = arith.constant 0 : index
    %c0_5 = arith.constant 0 : index
    %5 = vector.load %arg4[%c0_4, %c0_5] : memref<64x1xf32, #tpu.memory_space<vmem>>, vector<64x1xf32>
    %6 = arith.subf %3, %4 : vector<64x7xf32>
    %7 = math.absf %6 : vector<64x7xf32>
    %cst = arith.constant 1.000000e+00 : f32
    %8 = vector.broadcast %cst : f32 to vector<64x7xf32>
    %9 = arith.cmpf olt, %7, %8 : vector<64x7xf32>
    %cst_6 = arith.constant 5.000000e-01 : f32
    %10 = vector.broadcast %cst_6 : f32 to vector<64x7xf32>
    %11 = arith.mulf %10, %6 : vector<64x7xf32>
    %12 = arith.mulf %11, %6 : vector<64x7xf32>
    %cst_7 = arith.constant 5.000000e-01 : f32
    %13 = vector.broadcast %cst_7 : f32 to vector<64x7xf32>
    %14 = arith.subf %7, %13 : vector<64x7xf32>
    %15 = arith.select %9, %12, %14 : vector<64x7xi1>, vector<64x7xf32>
    %c1_i32 = arith.constant 1 : i32
    %16 = arith.muli %arg0, %c1_i32 : i32
    %17 = arith.addi %16, %arg1 : i32
    %c64_i32 = arith.constant 64 : i32
    %18 = arith.muli %17, %c64_i32 : i32
    %19 = tpu.iota {dimensions = array<i32: 0>} : vector<64x1xi32>
    %20 = vector.broadcast %18 : i32 to vector<64x1xi32>
    %21 = arith.addi %20, %19 : vector<64x1xi32>
    %c64_i32_8 = arith.constant 64 : i32
    %22 = vector.broadcast %c64_i32_8 : i32 to vector<64x1xi32>
    %23 = arith.cmpi slt, %21, %22 : vector<64x1xi32>
    %cst_9 = arith.constant 5.500000e-01 : f32
    %24 = vector.broadcast %cst_9 : f32 to vector<64x1xf32>
    %25 = arith.cmpf oge, %5, %24 : vector<64x1xf32>
    %26 = arith.andi %23, %25 : vector<64x1xi1>
    %cst_10 = arith.constant 0.000000e+00 : f32
    %27 = vector.shape_cast %26 : vector<64x1xi1> to vector<64x1xi1>
    %28 = vector.broadcast %27 : vector<64x1xi1> to vector<64x7xi1>
    %29 = vector.broadcast %cst_10 : f32 to vector<64x7xf32>
    %30 = arith.select %28, %15, %29 : vector<64x7xi1>, vector<64x7xf32>
    %cst_11 = arith.constant dense<0.000000e+00> : vector<7xf32>
    %31 = vector.multi_reduction <add>, %30, %cst_11 [0] : vector<64x7xf32> to vector<7xf32>
    %32 = vector.shape_cast %31 : vector<7xf32> to vector<1x7xf32>
    %33 = arith.extui %26 : vector<64x1xi1> to vector<64x1xi32>
    %34 = arith.sitofp %33 : vector<64x1xi32> to vector<64x1xf32>
    %cst_12 = arith.constant dense<0.000000e+00> : vector<1xf32>
    %35 = vector.multi_reduction <add>, %34, %cst_12 [0] : vector<64x1xf32> to vector<1xf32>
    %36 = vector.shape_cast %35 : vector<1xf32> to vector<1x1xf32>
    %c0_13 = arith.constant 0 : index
    %c0_14 = arith.constant 0 : index
    %c0_15 = arith.constant 0 : index
    %37 = vector.load %arg5[%c0_13, %c0_14, %c0_15] : memref<1x1x7xf32, #tpu.memory_space<vmem>>, vector<1x1x7xf32>
    %38 = vector.shape_cast %32 : vector<1x7xf32> to vector<1x1x7xf32>
    %39 = arith.addf %37, %38 : vector<1x1x7xf32>
    %c0_16 = arith.constant 0 : index
    %c0_17 = arith.constant 0 : index
    %c0_18 = arith.constant 0 : index
    %40 = vector.load %arg5[%c0_16, %c0_17, %c0_18] : memref<1x1x7xf32, #tpu.memory_space<vmem>>, vector<1x1x7xf32>
    tpu.vector_store %arg5[%c0_16, %c0_17, %c0_18], %39 {strides = array<i32>} : memref<1x1x7xf32, #tpu.memory_space<vmem>>, vector<1x1x7xf32>,
    %c0_19 = arith.constant 0 : index
    %c0_20 = arith.constant 0 : index
    %c0_21 = arith.constant 0 : index
    %41 = vector.load %arg6[%c0_19, %c0_20, %c0_21] : memref<1x1x1xf32, #tpu.memory_space<vmem>>, vector<1x1x1xf32>
    %42 = vector.shape_cast %36 : vector<1x1xf32> to vector<1x1x1xf32>
    %43 = arith.addf %41, %42 : vector<1x1x1xf32>
    %c0_22 = arith.constant 0 : index
    %c0_23 = arith.constant 0 : index
    %c0_24 = arith.constant 0 : index
    %44 = vector.load %arg6[%c0_22, %c0_23, %c0_24] : memref<1x1x1xf32, #tpu.memory_space<vmem>>, vector<1x1x1xf32>
    tpu.vector_store %arg6[%c0_22, %c0_23, %c0_24], %43 {strides = array<i32>} : memref<1x1x1xf32, #tpu.memory_space<vmem>>, vector<1x1x1xf32>,
    return
  }
  func.func @transform_0(%arg0: i32, %arg1: i32) -> (i32, i32) {
    %c1_i32 = arith.constant 1 : i32
    %0 = arith.muli %arg0, %c1_i32 : i32
    %1 = arith.addi %0, %arg1 : i32
    %c0_i32 = arith.constant 0 : i32
    %2 = arith.minsi %1, %c0_i32 : i32
    %c0_i32_0 = arith.constant 0 : i32
    %c0_i32_1 = arith.constant 0 : i32
    return %2, %c0_i32_0 : i32, i32
  }
  func.func @transform_1(%arg0: i32, %arg1: i32) -> (i32, i32) {
    %c1_i32 = arith.constant 1 : i32
    %0 = arith.muli %arg0, %c1_i32 : i32
    %1 = arith.addi %0, %arg1 : i32
    %c0_i32 = arith.constant 0 : i32
    %2 = arith.minsi %1, %c0_i32 : i32
    %c0_i32_0 = arith.constant 0 : i32
    %c0_i32_1 = arith.constant 0 : i32
    return %2, %c0_i32_0 : i32, i32
  }
  func.func @transform_2(%arg0: i32, %arg1: i32) -> (i32, i32) {
    %c1_i32 = arith.constant 1 : i32
    %0 = arith.muli %arg0, %c1_i32 : i32
    %1 = arith.addi %0, %arg1 : i32
    %c0_i32 = arith.constant 0 : i32
    %2 = arith.minsi %1, %c0_i32 : i32
    %c0_i32_0 = arith.constant 0 : i32
    %c0_i32_1 = arith.constant 0 : i32
    return %2, %c0_i32_0 : i32, i32
  }
  func.func @transform_3(%arg0: i32, %arg1: i32) -> (i32, i32, i32) {
    %c0_i32 = arith.constant 0 : i32
    %c0_i32_0 = arith.constant 0 : i32
    %c0_i32_1 = arith.constant 0 : i32
    return %arg0, %c0_i32, %c0_i32_0 : i32, i32, i32
  }
  func.func @transform_4(%arg0: i32, %arg1: i32) -> (i32, i32, i32) {
    %c0_i32 = arith.constant 0 : i32
    %c0_i32_0 = arith.constant 0 : i32
    %c0_i32_1 = arith.constant 0 : i32
    return %arg0, %c0_i32, %c0_i32_0 : i32, i32, i32
  }
}

</mosaic_0001>

<llo_original>
// kernel: tpu_custom_call.1
$region0: #{tpu_custom_call.1}
  #allocation0 [shape = 'u32[]', space=smem, size = 0x4, offset = 0x4, fixed_abs, tag = 'smem constant byte address 0x4 - core index']
  #allocation1 [shape = 'u32[72,128]{1,0:T(1,128)}', space=vmem, size = 0x9000, scoped, tag = 'internal scratch']
  %s0 = inlined_call_operand.vmem [shape: f32[64,7], index: 0, kind: input, shape index: {}]
  %s1 = inlined_call_operand.vmem [shape: f32[64,7], index: 1, kind: input, shape index: {}]
  %s2 = inlined_call_operand.vmem [shape: f32[64,1], index: 2, kind: input, shape index: {}]
  %s3 = inlined_call_operand.hbm [shape: f32[1,1,7], index: 3, kind: output, shape index: {0}]
  %s4 = inlined_call_operand.hbm [shape: f32[1,1,1], index: 4, kind: output, shape index: {1}]
  %5 = xla_tuple %s3, %s4
  %s6 = sld [smem:[#allocation0]]
  $region34: #{tpu_custom_call.1} parent=0
    _
  %s8 = ssub.s32 1, %s6
  %s9 = scalar_select 0, %s8, %s6
  $region1: #{tpu_custom_call.1} parent=0
    #allocation2 [shape = 'u8[512]{0}', space=vmem, size = 0x400, scoped, tag = 'output window, operand 0, single buffered']
    #allocation3 [shape = 's32[1]{0}', space=sflag, size = 0x4, scoped, tag = 'scoped memory for tpu_custom_call.1']
    #allocation4 [shape = 'u8[512]{0}', space=vmem, size = 0x400, scoped, tag = 'output window, operand 1, single buffered']
    #allocation5 [shape = 's32[1]{0}', space=sflag, size = 0x4, scoped, tag = 'scoped memory for tpu_custom_call.1']
    %10 = vsyncpa [#allocation3], 0
    %11 = vsyncpa [#allocation5], 0
    // Predicated region
    $region2: #{tpu_custom_call.1} parent=1 // pred_check
      _
    $region3: #{tpu_custom_call.1} parent=1 // pred_check_branch
      %13 = sbr.rel (0) target = $region5
    $region4: #{tpu_custom_call.1} parent=1 // pred_region
      %s14 = sadd.s32 0, 0
      %p15 = scmp.lt.s32.totalorder %s14, 0
      %s16 = scalar_select %p15, %s14, 0
      %s17 = smul.u32 8, %s16
      %p18 = scmp.lt.s32.totalorder %s17, 7
      %s19 = scalar_select %p18, %s17, 7
      %s20 = smul.addr %s19, 8
      %s21 = scalar_lea.vmem %s0, %s20
      %s22 = sadd.s32 0, 0
      %p23 = scmp.lt.s32.totalorder %s22, 0
      %s24 = scalar_select %p23, %s22, 0
      %s25 = smul.u32 8, %s24
    $region5: #{tpu_custom_call.1} parent=1 // pred_fallthru
      _
    // Predicated region
    $region6: #{tpu_custom_call.1} parent=1 // pred_check
      _
    $region7: #{tpu_custom_call.1} parent=1 // pred_check_branch
      %27 = sbr.rel (0) target = $region9
    $region8: #{tpu_custom_call.1} parent=1 // pred_region
      %s28 = sadd.s32 0, 0
      %p29 = scmp.lt.s32.totalorder %s28, 0
      %s30 = scalar_select %p29, %s28, 0
      %s31 = smul.u32 8, %s30
      %p32 = scmp.lt.s32.totalorder %s31, 7
      %s33 = scalar_select %p32, %s31, 7
      %s34 = smul.addr %s33, 8
      %s35 = scalar_lea.vmem %s1, %s34
      %s36 = sadd.s32 0, 0
      %p37 = scmp.lt.s32.totalorder %s36, 0
      %s38 = scalar_select %p37, %s36, 0
      %s39 = smul.u32 8, %s38
    $region9: #{tpu_custom_call.1} parent=1 // pred_fallthru
      _
    // Predicated region
    $region10: #{tpu_custom_call.1} parent=1 // pred_check
      _
    $region11: #{tpu_custom_call.1} parent=1 // pred_check_branch
      %41 = sbr.rel (0) target = $region13
    $region12: #{tpu_custom_call.1} parent=1 // pred_region
      %s42 = sadd.s32 0, 0
      %p43 = scmp.lt.s32.totalorder %s42, 0
      %s44 = scalar_select %p43, %s42, 0
      %s45 = smul.u32 8, %s44
      %p46 = scmp.lt.s32.totalorder %s45, 7
      %s47 = scalar_select %p46, %s45, 7
      %s48 = smul.addr %s47, 8
      %s49 = scalar_lea.vmem %s2, %s48
      %s50 = sadd.s32 0, 0
      %p51 = scmp.lt.s32.totalorder %s50, 0
      %s52 = scalar_select %p51, %s50, 0
      %s53 = smul.u32 8, %s52
    $region13: #{tpu_custom_call.1} parent=1 // pred_fallthru
      _
    %s54 = sadd.s32 0, 0
    %p55 = scmp.lt.s32.totalorder %s54, 0
    %s56 = scalar_select %p55, %s54, 0
    %s57 = smul.u32 8, %s56
    %p58 = scmp.lt.s32.totalorder %s57, 7
    %s59 = scalar_select %p58, %s57, 7
    %s60 = smul.addr %s59, 8
    %s61 = scalar_lea.vmem %s0, %s60
    %s62 = sadd.s32 0, 0
    %p63 = scmp.lt.s32.totalorder %s62, 0
    %s64 = scalar_select %p63, %s62, 0
    %s65 = smul.u32 8, %s64
    %p66 = scmp.lt.s32.totalorder %s65, 7
    %s67 = scalar_select %p66, %s65, 7
    %s68 = smul.addr %s67, 8
    %s69 = scalar_lea.vmem %s1, %s68
    %s70 = sadd.s32 0, 0
    %p71 = scmp.lt.s32.totalorder %s70, 0
    %s72 = scalar_select %p71, %s70, 0
    %s73 = smul.u32 8, %s72
    %p74 = scmp.lt.s32.totalorder %s73, 7
    %s75 = scalar_select %p74, %s73, 7
    %s76 = smul.addr %s75, 8
    %s77 = scalar_lea.vmem %s2, %s76
    %s78 = sadd.s32 0, 0
    %p79 = scmp.lt.s32.totalorder %s78, 0
    %s80 = scalar_select %p79, %s78, 0
    %s81 = smul.u32 8, %s80
    %p82 = scmp.lt.s32.totalorder %s81, 7
    %s83 = scalar_select %p82, %s81, 7
    %s84 = smul.addr %s83, 8
    %s85 = scalar_lea.vmem %s0, %s84
    %s86 = sadd.s32 0, 0
    %p87 = scmp.lt.s32.totalorder %s86, 0
    %s88 = scalar_select %p87, %s86, 0
    %s89 = smul.u32 8, %s88
    %s90 = sadd.s32 0, 0
    %p91 = scmp.lt.s32.totalorder %s90, 0
    %s92 = scalar_select %p91, %s90, 0
    %s93 = smul.u32 8, %s92
    %p94 = scmp.lt.s32.totalorder %s93, 7
    %s95 = scalar_select %p94, %s93, 7
    %s96 = smul.addr %s95, 8
    %s97 = scalar_lea.vmem %s1, %s96
    %s98 = sadd.s32 0, 0
    %p99 = scmp.lt.s32.totalorder %s98, 0
    %s100 = scalar_select %p99, %s98, 0
    %s101 = smul.u32 8, %s100
    %s102 = sadd.s32 0, 0
    %p103 = scmp.lt.s32.totalorder %s102, 0
    %s104 = scalar_select %p103, %s102, 0
    %s105 = smul.u32 8, %s104
    %p106 = scmp.lt.s32.totalorder %s105, 7
    %s107 = scalar_select %p106, %s105, 7
    %s108 = smul.addr %s107, 8
    %s109 = scalar_lea.vmem %s2, %s108
    %s110 = sadd.s32 0, 0
    %p111 = scmp.lt.s32.totalorder %s110, 0
    %s112 = scalar_select %p111, %s110, 0
    %s113 = smul.u32 8, %s112
    %p114 = scmp.eq.s32.totalorder 0, 0
    // Predicated region
    $region14: #{tpu_custom_call.1} parent=1 // pred_check
      %p115 = pneg %p114
    $region15: #{tpu_custom_call.1} parent=1 // pred_check_branch
      %117 = sbr.rel (%p115) target = $region17
    $region16: #{tpu_custom_call.1} parent=1 // pred_region
      %vm118 = vcmask 49152
      %119 = vst.msk [vmem:[#allocation2] sm:$0x1] %vm118, 0.0
      %vm120 = vcmask 0
      %121 = vst.msk [vmem:[#allocation4] sm:$0x1] %vm120, 0.0
    $region17: #{tpu_custom_call.1} parent=1 // pred_fallthru
      _
    %v122 = vld [vmem:[%s85] sm:$0xff]
    %v123 = vld [vmem:[%s85 + $0x8] sm:$0xff]
    %v124 = vld [vmem:[%s85 + $0x10] sm:$0xff]
    %v125 = vld [vmem:[%s85 + $0x18] sm:$0xff]
    %v126 = vld [vmem:[%s85 + $0x20] sm:$0xff]
    %v127 = vld [vmem:[%s85 + $0x28] sm:$0xff]
    %v128 = vld [vmem:[%s85 + $0x30] sm:$0xff]
    %v129 = vld [vmem:[%s85 + $0x38] sm:$0xff]
    %v130 = vld [vmem:[%s97] sm:$0xff]
    %v131 = vld [vmem:[%s97 + $0x8] sm:$0xff]
    %v132 = vld [vmem:[%s97 + $0x10] sm:$0xff]
    %v133 = vld [vmem:[%s97 + $0x18] sm:$0xff]
    %v134 = vld [vmem:[%s97 + $0x20] sm:$0xff]
    %v135 = vld [vmem:[%s97 + $0x28] sm:$0xff]
    %v136 = vld [vmem:[%s97 + $0x30] sm:$0xff]
    %v137 = vld [vmem:[%s97 + $0x38] sm:$0xff]
    %v138 = vld [vmem:[%s109] sm:$0xff]
    %v139 = vld [vmem:[%s109 + $0x8] sm:$0xff]
    %v140 = vld [vmem:[%s109 + $0x10] sm:$0xff]
    %v141 = vld [vmem:[%s109 + $0x18] sm:$0xff]
    %v142 = vld [vmem:[%s109 + $0x20] sm:$0xff]
    %v143 = vld [vmem:[%s109 + $0x28] sm:$0xff]
    %v144 = vld [vmem:[%s109 + $0x30] sm:$0xff]
    %v145 = vld [vmem:[%s109 + $0x38] sm:$0xff]
    %v146 = vsub.f32 %v122, %v130
    %v147 = vsub.f32 %v123, %v131
    %v148 = vsub.f32 %v124, %v132
    %v149 = vsub.f32 %v125, %v133
    %v150 = vsub.f32 %v126, %v134
    %v151 = vsub.f32 %v127, %v135
    %v152 = vsub.f32 %v128, %v136
    %v153 = vsub.f32 %v129, %v137
    %v154 = vand.u32 2147483647, %v146
    %v155 = vand.u32 2147483647, %v147
    %v156 = vand.u32 2147483647, %v148
    %v157 = vand.u32 2147483647, %v149
    %v158 = vand.u32 2147483647, %v150
    %v159 = vand.u32 2147483647, %v151
    %v160 = vand.u32 2147483647, %v152
    %v161 = vand.u32 2147483647, %v153
    %vm162 = vcmp.lt.f32.partialorder %v154, 1.0
    %vm163 = vcmp.lt.f32.partialorder %v155, 1.0
    %vm164 = vcmp.lt.f32.partialorder %v156, 1.0
    %vm165 = vcmp.lt.f32.partialorder %v157, 1.0
    %vm166 = vcmp.lt.f32.partialorder %v158, 1.0
    %vm167 = vcmp.lt.f32.partialorder %v159, 1.0
    %vm168 = vcmp.lt.f32.partialorder %v160, 1.0
    %vm169 = vcmp.lt.f32.partialorder %v161, 1.0
    %v170 = vmul.f32 %v146, 0.5
    %v171 = vmul.f32 %v147, 0.5
    %v172 = vmul.f32 %v148, 0.5
    %v173 = vmul.f32 %v149, 0.5
    %v174 = vmul.f32 %v150, 0.5
    %v175 = vmul.f32 %v151, 0.5
    %v176 = vmul.f32 %v152, 0.5
    %v177 = vmul.f32 %v153, 0.5
    %v178 = vmul.f32 %v170, %v146
    %v179 = vmul.f32 %v171, %v147
    %v180 = vmul.f32 %v172, %v148
    %v181 = vmul.f32 %v173, %v149
    %v182 = vmul.f32 %v174, %v150
    %v183 = vmul.f32 %v175, %v151
    %v184 = vmul.f32 %v176, %v152
    %v185 = vmul.f32 %v177, %v153
    %v186 = vsub.f32 %v154, 0.5
    %v187 = vsub.f32 %v155, 0.5
    %v188 = vsub.f32 %v156, 0.5
    %v189 = vsub.f32 %v157, 0.5
    %v190 = vsub.f32 %v158, 0.5
    %v191 = vsub.f32 %v159, 0.5
    %v192 = vsub.f32 %v160, 0.5
    %v193 = vsub.f32 %v161, 0.5
    %v194 = vsel %vm162, %v178, %v186
    %v195 = vsel %vm163, %v179, %v187
    %v196 = vsel %vm164, %v180, %v188
    %v197 = vsel %vm165, %v181, %v189
    %v198 = vsel %vm166, %v182, %v190
    %v199 = vsel %vm167, %v183, %v191
    %v200 = vsel %vm168, %v184, %v192
    %v201 = vsel %vm169, %v185, %v193
    %s202 = sadd.s32 0, 0
    %s203 = smul.u32 %s202, 64
    %v204 = vlaneseq
    %v205 = vshrl.u32 %v204, 7
    %v206 = vadd.s32 %v205, 8
    %v207 = vadd.s32 %v205, 16
    %v208 = vadd.s32 %v205, 24
    %v209 = vadd.s32 %v205, 32
    %v210 = vadd.s32 %v205, 40
    %v211 = vadd.s32 %v205, 48
    %v212 = vadd.s32 %v205, 56
    %v213 = vstv %s203
    %v214 = vadd.s32 %v213, %v205
    %v215 = vadd.s32 %v213, %v206
    %v216 = vadd.s32 %v213, %v207
    %v217 = vadd.s32 %v213, %v208
    %v218 = vadd.s32 %v213, %v209
    %v219 = vadd.s32 %v213, %v210
    %v220 = vadd.s32 %v213, %v211
    %v221 = vadd.s32 %v213, %v212
    %vm222 = vcmp.lt.s32.totalorder %v214, 64
    %vm223 = vcmp.lt.s32.totalorder %v215, 64
    %vm224 = vcmp.lt.s32.totalorder %v216, 64
    %vm225 = vcmp.lt.s32.totalorder %v217, 64
    %vm226 = vcmp.lt.s32.totalorder %v218, 64
    %vm227 = vcmp.lt.s32.totalorder %v219, 64
    %vm228 = vcmp.lt.s32.totalorder %v220, 64
    %vm229 = vcmp.lt.s32.totalorder %v221, 64
    %vm230 = vcmp.ge.f32.partialorder %v138, 0.55
    %vm231 = vcmp.ge.f32.partialorder %v139, 0.55
    %vm232 = vcmp.ge.f32.partialorder %v140, 0.55
    %vm233 = vcmp.ge.f32.partialorder %v141, 0.55
    %vm234 = vcmp.ge.f32.partialorder %v142, 0.55
    %vm235 = vcmp.ge.f32.partialorder %v143, 0.55
    %vm236 = vcmp.ge.f32.partialorder %v144, 0.55
    %vm237 = vcmp.ge.f32.partialorder %v145, 0.55
    %vm238 = vmand %vm222, %vm230
    %vm239 = vmand %vm223, %vm231
    %vm240 = vmand %vm224, %vm232
    %vm241 = vmand %vm225, %vm233
    %vm242 = vmand %vm226, %vm234
    %vm243 = vmand %vm227, %vm235
    %vm244 = vmand %vm228, %vm236
    %vm245 = vmand %vm229, %vm237
    %v246 = vsel %vm238, 1, 0
    %v247 = vsel %vm239, 1, 0
    %v248 = vsel %vm240, 1, 0
    %v249 = vsel %vm241, 1, 0
    %v250 = vsel %vm242, 1, 0
    %v251 = vsel %vm243, 1, 0
    %v252 = vsel %vm244, 1, 0
    %v253 = vsel %vm245, 1, 0
    %254 = vset.pattern.permute.xlu0 0
    %255 = vperm.xlu0 %254, %v246
    %v256 = vpop.permute.xlu0 %255
    %257 = vset.pattern.permute.xlu0 0
    %258 = vperm.xlu0 %257, %v247
    %v259 = vpop.permute.xlu0 %258
    %260 = vset.pattern.permute.xlu0 0
    %261 = vperm.xlu0 %260, %v248
    %v262 = vpop.permute.xlu0 %261
    %263 = vset.pattern.permute.xlu0 0
    %264 = vperm.xlu0 %263, %v249
    %v265 = vpop.permute.xlu0 %264
    %266 = vset.pattern.permute.xlu0 0
    %267 = vperm.xlu0 %266, %v250
    %v268 = vpop.permute.xlu0 %267
    %269 = vset.pattern.permute.xlu0 0
    %270 = vperm.xlu0 %269, %v251
    %v271 = vpop.permute.xlu0 %270
    %272 = vset.pattern.permute.xlu0 0
    %273 = vperm.xlu0 %272, %v252
    %v274 = vpop.permute.xlu0 %273
    %275 = vset.pattern.permute.xlu0 0
    %276 = vperm.xlu0 %275, %v253
    %v277 = vpop.permute.xlu0 %276
    %vm278 = vcmp.eq.s32.totalorder %v256, 1
    %vm279 = vcmp.eq.s32.totalorder %v259, 1
    %vm280 = vcmp.eq.s32.totalorder %v262, 1
    %vm281 = vcmp.eq.s32.totalorder %v265, 1
    %vm282 = vcmp.eq.s32.totalorder %v268, 1
    %vm283 = vcmp.eq.s32.totalorder %v271, 1
    %vm284 = vcmp.eq.s32.totalorder %v274, 1
    %vm285 = vcmp.eq.s32.totalorder %v277, 1
    %v286 = vsel %vm278, %v194, 0.0
    %v287 = vsel %vm279, %v195, 0.0
    %v288 = vsel %vm280, %v196, 0.0
    %v289 = vsel %vm281, %v197, 0.0
    %v290 = vsel %vm282, %v198, 0.0
    %v291 = vsel %vm283, %v199, 0.0
    %v292 = vsel %vm284, %v200, 0.0
    %v293 = vsel %vm285, %v201, 0.0
    %vm294 = vcmask 56320
    %v295 = vsel %vm294, %v286, 0.0
    %v296 = vsel %vm294, %v287, 0.0
    %v297 = vadd.f32 %v295, %v296
    %v298 = vsel %vm294, %v288, 0.0
    %v299 = vadd.f32 %v297, %v298
    %v300 = vsel %vm294, %v289, 0.0
    %v301 = vadd.f32 %v299, %v300
    %v302 = vsel %vm294, %v290, 0.0
    %v303 = vadd.f32 %v301, %v302
    %v304 = vsel %vm294, %v291, 0.0
    %v305 = vadd.f32 %v303, %v304
    %v306 = vsel %vm294, %v292, 0.0
    %v307 = vadd.f32 %v305, %v306
    %v308 = vsel %vm294, %v293, 0.0
    %v309 = vadd.f32 %v307, %v308
    %v310 = vrot.slane %v309, 4
    %v311 = vadd.f32 %v309, %v310
    %v312 = vrot.slane %v311, 2
    %v313 = vadd.f32 %v311, %v312
    %v314 = vrot.slane %v313, 1
    %v315 = vadd.f32 %v313, %v314
    %v316 = vcvt.s32.f32 %v246
    %v317 = vcvt.s32.f32 %v247
    %v318 = vcvt.s32.f32 %v248
    %v319 = vcvt.s32.f32 %v249
    %v320 = vcvt.s32.f32 %v250
    %v321 = vcvt.s32.f32 %v251
    %v322 = vcvt.s32.f32 %v252
    %v323 = vcvt.s32.f32 %v253
    %vm324 = vcmask 7168
    %v325 = vsel %vm324, %v316, 0.0
    %v326 = vsel %vm324, %v317, 0.0
    %v327 = vadd.f32 %v325, %v326
    %v328 = vsel %vm324, %v318, 0.0
    %v329 = vadd.f32 %v327, %v328
    %v330 = vsel %vm324, %v319, 0.0
    %v331 = vadd.f32 %v329, %v330
    %v332 = vsel %vm324, %v320, 0.0
    %v333 = vadd.f32 %v331, %v332
    %v334 = vsel %vm324, %v321, 0.0
    %v335 = vadd.f32 %v333, %v334
    %v336 = vsel %vm324, %v322, 0.0
    %v337 = vadd.f32 %v335, %v336
    %v338 = vsel %vm324, %v323, 0.0
    %v339 = vadd.f32 %v337, %v338
    %v340 = vrot.slane %v339, 4
    %v341 = vadd.f32 %v339, %v340
    %v342 = vrot.slane %v341, 2
    %v343 = vadd.f32 %v341, %v342
    %v344 = vrot.slane %v343, 1
    %v345 = vadd.f32 %v343, %v344
    %v346 = vld [vmem:[#allocation2] sm:$0x1]
    %v347 = vadd.f32 %v346, %v315
    %vm348 = vcmask 49152
    %349 = vst.msk [vmem:[#allocation2] sm:$0x1] %vm348, %v347
    %v350 = vld [vmem:[#allocation4] sm:$0x1]
    %v351 = vadd.f32 %v350, %v345
    %vm352 = vcmask 0
    %353 = vst.msk [vmem:[#allocation4] sm:$0x1] %vm352, %v351
    // Predicated region
    $region18: #{tpu_custom_call.1} parent=1 // pred_check
      _
    $region19: #{tpu_custom_call.1} parent=1 // pred_check_branch
      %355 = sbr.rel (0) target = $region21
    $region20: #{tpu_custom_call.1} parent=1 // pred_region
      %357 = vsyncadd [#allocation3], 0
      %s359 = sshll.u32 [#allocation2], 4
      %s360 = int_to_ptr.vmem [resolvable:$true] %s359
      %s361 = sshll.u32 %s3, 4
      %s362 = int_to_ptr.hbm [resolvable:$true] %s361
      %364 = dma.vmem_to_hbm [thread:$0]  %s360, 16, %s362, [#allocation3]
    $region21: #{tpu_custom_call.1} parent=1 // pred_fallthru
      _
    // Predicated region
    $region22: #{tpu_custom_call.1} parent=1 // pred_check
      _
    $region23: #{tpu_custom_call.1} parent=1 // pred_check_branch
      %366 = sbr.rel (0) target = $region25
    $region24: #{tpu_custom_call.1} parent=1 // pred_region
      %368 = vsyncadd [#allocation5], 0
      %s370 = sshll.u32 [#allocation4], 4
      %s371 = int_to_ptr.vmem [resolvable:$true] %s370
      %s372 = sshll.u32 %s4, 4
      %s373 = int_to_ptr.hbm [resolvable:$true] %s372
      %375 = dma.vmem_to_hbm [thread:$0]  %s371, 16, %s373, [#allocation5]
    $region25: #{tpu_custom_call.1} parent=1 // pred_fallthru
      _
    // Predicated region
    $region26: #{tpu_custom_call.1} parent=1 // pred_check
      _
    $region27: #{tpu_custom_call.1} parent=1 // pred_check_branch
      %377 = sbr.rel (0) target = $region29
    $region28: #{tpu_custom_call.1} parent=1 // pred_region
      %379 = dma.done [#allocation3], 16
    $region29: #{tpu_custom_call.1} parent=1 // pred_fallthru
      _
    // Predicated region
    $region30: #{tpu_custom_call.1} parent=1 // pred_check
      _
    $region31: #{tpu_custom_call.1} parent=1 // pred_check_branch
      %381 = sbr.rel (0) target = $region33
    $region32: #{tpu_custom_call.1} parent=1 // pred_region
      %383 = dma.done [#allocation5], 16
    $region33: #{tpu_custom_call.1} parent=1 // pred_fallthru
      _
    %384 = vsyncpa [#allocation3], 1
    %385 = vsyncpa [#allocation5], 1

</llo_original>
